<compile_context>
chip_gen: v5e
topology: v5e:2x2
jax: 0.10.0
libtpu: 0.0.40
codegen_flags: <defaults>
</compile_context>

<pallas_src>
import functools

import jax
import jax.numpy as jnp
from jax.experimental import pallas as pl
from jax.experimental.pallas import tpu as pltpu


def _focal_kernel(x_ref, t_ref, a_ref, out_ref, *, gamma):
    """Per-row focal loss for one (tile_n, C) block of logits.

    x_ref:   (tile_n, C) logits
    t_ref:   (tile_n, 1) int32 target class ids
    a_ref:   (1, C)      f32 per-class alpha weights (ones when alpha is None)
    out_ref: (tile_n, 1) f32 per-row loss
    """
    x = x_ref[...].astype(jnp.float32)            # (tile_n, C)
    t = t_ref[...]                                # (tile_n, 1) int32

    # Numerically stable log_softmax over the class (lane) dim.
    m = jnp.max(x, axis=1, keepdims=True)
    z = x - m
    lse = jnp.log(jnp.sum(jnp.exp(z), axis=1, keepdims=True))
    logp = z - lse                                # (tile_n, C)

    # One-hot gather of the target class via lane-iota compare (no real gather).
    cls = jax.lax.broadcasted_iota(jnp.int32, x.shape, 1)
    onehot = cls == t                             # (tile_n, C) bool

    logpt = jnp.sum(jnp.where(onehot, logp, 0.0), axis=1, keepdims=True)
    pt = jnp.exp(logpt)                           # before alpha, as in torch

    # alpha[target] via the same one-hot; a_ref is all-ones when alpha is None.
    at = jnp.sum(jnp.where(onehot, a_ref[...], 0.0), axis=1, keepdims=True)
    logpt_w = logpt * at

    one_minus_pt = jnp.maximum(1.0 - pt, 0.0)
    if gamma == 0.0:
        mod = jnp.ones_like(pt)
    elif float(gamma).is_integer() and 0 < gamma <= 8:
        mod = one_minus_pt
        for _ in range(int(gamma) - 1):
            mod = mod * one_minus_pt
    else:
        # x**g = exp(g*log(x)); define 0**g = 0 for g > 0 (EUP exp/log only).
        safe = jnp.maximum(one_minus_pt, 1e-30)
        mod = jnp.where(one_minus_pt > 0.0,
                        jnp.exp(jnp.float32(gamma) * jnp.log(safe)),
                        0.0)

    out_ref[...] = -mod * logpt_w


def focal_loss(logits, target, gamma=0.0, alpha=None):
    """Focal loss matching the PyTorch module's forward (input [N, C], target [N])."""
    n, c = logits.shape
    target = jnp.reshape(target, (-1,)).astype(jnp.int32)
    assert target.shape[0] == n

    # Build the per-class alpha vector (torch gathers alpha by target class id).
    if alpha is None:
        alpha_vec = jnp.ones((1, c), dtype=jnp.float32)
    else:
        if isinstance(alpha, (float, int)):
            a = jnp.array([alpha, 1.0 - alpha], dtype=jnp.float32)
        else:
            a = jnp.asarray(alpha, dtype=jnp.float32).reshape(-1)
        a = jnp.pad(a, (0, max(0, c - a.shape[0])))[:c]   # tiny (C,) vector only
        alpha_vec = a.reshape(1, c)

    # Row tile: multiple of 8 sublanes, logits block capped at ~2 MiB so
    # 2x double-buffered blocks fit under every generation's default scoped VMEM.
    if n % 8 == 0:
        cap = max(8, ((2 * 1024 * 1024) // (4 * c)) // 8 * 8)
        tile_n = min(n, cap, 1024)
    else:
        tile_n = n  # block equals the full array dim (allowed for any size)
    grid_n = pl.cdiv(n, tile_n)
    n_pad = grid_n * tile_n      # output rows (any extra rows are sliced off)

    target2d = target.reshape(n, 1)

    kernel = functools.partial(_focal_kernel, gamma=float(gamma))
    per_row = pl.pallas_call(
        kernel,
        out_shape=jax.ShapeDtypeStruct((n_pad, 1), jnp.float32),
        grid_spec=pltpu.PrefetchScalarGridSpec(
            num_scalar_prefetch=0,
            grid=(grid_n,),
            in_specs=[
                pl.BlockSpec((tile_n, c), lambda i: (i, 0)),   # logits tile
                pl.BlockSpec((tile_n, 1), lambda i: (i, 0)),   # targets tile
                pl.BlockSpec((1, c), lambda i: (0, 0)),        # alpha row (shared)
            ],
            out_specs=pl.BlockSpec((tile_n, 1), lambda i: (i, 0)),
        ),
        compiler_params=pltpu.CompilerParams(
            # Rows are independent -> parallel axis lets v7x split across its 2 TCs.
            dimension_semantics=("parallel",),
        ),
    )(logits, target2d, alpha_vec)

    return jnp.mean(per_row[:n, 0])


def _focal_ref(logits, target, gamma=0.0, alpha=None):
    """Pure-JAX reference mirroring the PyTorch forward."""
    logp = jax.nn.log_softmax(logits, axis=1)
    logpt = jnp.take_along_axis(logp, target[:, None].astype(jnp.int32), axis=1)[:, 0]
    pt = jnp.exp(logpt)
    if alpha is not None:
        if isinstance(alpha, (float, int)):
            a = jnp.array([alpha, 1.0 - alpha], dtype=jnp.float32)
        else:
            a = jnp.asarray(alpha, dtype=jnp.float32).reshape(-1)
        logpt = logpt * a[target]
    return jnp.mean(-((1.0 - pt) ** gamma) * logpt)


if __name__ == "__main__":
    key = jax.random.PRNGKey(0)
    k1, k2 = jax.random.split(key)
    n, c = 16, 10
    logits = jax.random.normal(k1, (n, c), dtype=jnp.float32)
    target = jax.random.randint(k2, (n,), 0, c, dtype=jnp.int32)

    # Case 1: module defaults (gamma=0, alpha=None) -> plain NLL mean.
    l1 = focal_loss(logits, target)
    jax.block_until_ready(l1)
    r1 = _focal_ref(logits, target, gamma=0.0, alpha=None)
    assert jnp.allclose(l1, r1, rtol=1e-5, atol=1e-5), (l1, r1)

    # Case 2: gamma=2 with a per-class alpha list.
    alpha = [0.1 * (i + 1) for i in range(c)]
    l2 = focal_loss(logits, target, gamma=2.0, alpha=alpha)
    jax.block_until_ready(l2)
    r2 = _focal_ref(logits, target, gamma=2.0, alpha=alpha)
    assert jnp.allclose(l2, r2, rtol=1e-5, atol=1e-5), (l2, r2)

    print("KERNEL_OK")
</pallas_src>

<mosaic_0001>
module attributes {stable_mosaic.version = 11 : i64} {
  func.func @_focal_kernel(%arg0: i32, %arg1: memref<16x10xf32, #tpu.memory_space<vmem>>, %arg2: memref<16x1xi32, #tpu.memory_space<vmem>>, %arg3: memref<1x10xf32, #tpu.memory_space<vmem>>, %arg4: memref<16x1xf32, #tpu.memory_space<vmem>>) attributes {dimension_semantics = [#tpu.dimension_semantics<parallel>], iteration_bounds = array<i64: 1>, scalar_prefetch = 0 : i64, scratch_operands = 0 : i64, tpu.core_type = #tpu.core_type<tc>, window_params = [{transform_indices = @transform_0, window_bounds = array<i64: 16, 10>}, {transform_indices = @transform_1, window_bounds = array<i64: 16, 1>}, {pipeline_mode = #tpu.pipeline_mode<synchronous>, transform_indices = @transform_2, window_bounds = array<i64: 1, 10>}, {transform_indices = @transform_3, window_bounds = array<i64: 16, 1>}]} {
    %c0 = arith.constant 0 : index
    %c0_0 = arith.constant 0 : index
    %0 = vector.load %arg1[%c0, %c0_0] : memref<16x10xf32, #tpu.memory_space<vmem>>, vector<16x10xf32>
    %c0_1 = arith.constant 0 : index
    %c0_2 = arith.constant 0 : index
    %1 = vector.load %arg2[%c0_1, %c0_2] : memref<16x1xi32, #tpu.memory_space<vmem>>, vector<16x1xi32>
    %cst = arith.constant dense<0xFF800000> : vector<16xf32>
    %2 = vector.multi_reduction <maximumf>, %0, %cst [1] : vector<16x10xf32> to vector<16xf32>
    %3 = vector.shape_cast %2 : vector<16xf32> to vector<16x1xf32>
    %4 = vector.broadcast %3 : vector<16x1xf32> to vector<16x10xf32>
    %5 = arith.subf %0, %4 : vector<16x10xf32>
    %6 = math.exp %5 : vector<16x10xf32>
    %cst_3 = arith.constant dense<0.000000e+00> : vector<16xf32>
    %7 = vector.multi_reduction <add>, %6, %cst_3 [1] : vector<16x10xf32> to vector<16xf32>
    %8 = vector.shape_cast %7 : vector<16xf32> to vector<16x1xf32>
    %9 = math.log %8 : vector<16x1xf32>
    %10 = vector.broadcast %9 : vector<16x1xf32> to vector<16x10xf32>
    %11 = arith.subf %5, %10 : vector<16x10xf32>
    %12 = tpu.iota {dimensions = array<i32: 1>} : vector<16x10xi32>
    %13 = vector.broadcast %1 : vector<16x1xi32> to vector<16x10xi32>
    %14 = arith.cmpi eq, %12, %13 : vector<16x10xi32>
    %cst_4 = arith.constant 0.000000e+00 : f32
    %15 = vector.broadcast %cst_4 : f32 to vector<16x10xf32>
    %16 = arith.select %14, %11, %15 : vector<16x10xi1>, vector<16x10xf32>
    %cst_5 = arith.constant dense<0.000000e+00> : vector<16xf32>
    %17 = vector.multi_reduction <add>, %16, %cst_5 [1] : vector<16x10xf32> to vector<16xf32>
    %18 = vector.shape_cast %17 : vector<16xf32> to vector<16x1xf32>
    %c0_6 = arith.constant 0 : index
    %c0_7 = arith.constant 0 : index
    %19 = vector.load %arg3[%c0_6, %c0_7] : memref<1x10xf32, #tpu.memory_space<vmem>>, vector<1x10xf32>
    %cst_8 = arith.constant 0.000000e+00 : f32
    %20 = vector.shape_cast %19 : vector<1x10xf32> to vector<1x10xf32>
    %21 = vector.broadcast %20 : vector<1x10xf32> to vector<16x10xf32>
    %22 = vector.broadcast %cst_8 : f32 to vector<16x10xf32>
    %23 = arith.select %14, %21, %22 : vector<16x10xi1>, vector<16x10xf32>
    %cst_9 = arith.constant dense<0.000000e+00> : vector<16xf32>
    %24 = vector.multi_reduction <add>, %23, %cst_9 [1] : vector<16x10xf32> to vector<16xf32>
    %25 = vector.shape_cast %24 : vector<16xf32> to vector<16x1xf32>
    %26 = arith.mulf %18, %25 : vector<16x1xf32>
    %cst_10 = arith.constant 1.000000e+00 : f32
    %27 = vector.broadcast %cst_10 : f32 to vector<16x1xf32>
    %cst_11 = arith.constant 0.000000e+00 : f32
    %28 = vector.broadcast %cst_11 : f32 to vector<16x1xf32>
    %29 = arith.subf %28, %27 : vector<16x1xf32>
    %30 = arith.mulf %29, %26 : vector<16x1xf32>
    %c0_12 = arith.constant 0 : index
    %c0_13 = arith.constant 0 : index
    %31 = vector.load %arg4[%c0_12, %c0_13] : memref<16x1xf32, #tpu.memory_space<vmem>>, vector<16x1xf32>
    tpu.vector_store %arg4[%c0_12, %c0_13], %30 {strides = array<i32>} : memref<16x1xf32, #tpu.memory_space<vmem>>, vector<16x1xf32>,
    return
  }
  func.func @transform_0(%arg0: i32) -> (i32, i32) {
    %c0_i32 = arith.constant 0 : i32
    %c0_i32_0 = arith.constant 0 : i32
    return %arg0, %c0_i32 : i32, i32
  }
  func.func @transform_1(%arg0: i32) -> (i32, i32) {
    %c0_i32 = arith.constant 0 : i32
    %c0_i32_0 = arith.constant 0 : i32
    return %arg0, %c0_i32 : i32, i32
  }
  func.func @transform_2(%arg0: i32) -> (i32, i32) {
    %c0_i32 = arith.constant 0 : i32
    %c0_i32_0 = arith.constant 0 : i32
    %c0_i32_1 = arith.constant 0 : i32
    return %c0_i32, %c0_i32_0 : i32, i32
  }
  func.func @transform_3(%arg0: i32) -> (i32, i32) {
    %c0_i32 = arith.constant 0 : i32
    %c0_i32_0 = arith.constant 0 : i32
    return %arg0, %c0_i32 : i32, i32
  }
}

</mosaic_0001>

<llo_original>
// kernel: tpu_custom_call.1
$region0: #{tpu_custom_call.1}
  #allocation0 [shape = 'u32[]', space=smem, size = 0x4, offset = 0x4, fixed_abs, tag = 'smem constant byte address 0x4 - core index']
  #allocation1 [shape = 'u32[72,128]{1,0:T(1,128)}', space=vmem, size = 0x9000, scoped, tag = 'internal scratch']
  %s0 = inlined_call_operand.vmem [shape: f32[16,10], index: 0, kind: input, shape index: {}]
  %s1 = inlined_call_operand.vmem [shape: s32[16,1], index: 1, kind: input, shape index: {}]
  %s2 = inlined_call_operand.vmem [shape: f32[1,10], index: 2, kind: input, shape index: {}]
  %s3 = inlined_call_operand.vmem [shape: f32[16,1], index: 3, kind: output, shape index: {}]
  %s4 = sld [smem:[#allocation0]]
  $region22: #{tpu_custom_call.1} parent=0
    _
  %s6 = ssub.s32 1, %s4
  %s7 = scalar_select 0, %s6, %s4
  // Predicated region
  $region2: #{tpu_custom_call.1} parent=0 // pred_check
    _
  $region3: #{tpu_custom_call.1} parent=0 // pred_check_branch
    %9 = sbr.rel (0) target = $region5
  $region4: #{tpu_custom_call.1} parent=0 // pred_region
    _
  $region5: #{tpu_custom_call.1} parent=0 // pred_fallthru
    _
  // Predicated region
  $region6: #{tpu_custom_call.1} parent=0 // pred_check
    _
  $region7: #{tpu_custom_call.1} parent=0 // pred_check_branch
    %11 = sbr.rel (0) target = $region9
  $region8: #{tpu_custom_call.1} parent=0 // pred_region
    _
  $region9: #{tpu_custom_call.1} parent=0 // pred_fallthru
    _
  // Predicated region
  $region10: #{tpu_custom_call.1} parent=0 // pred_check
    _
  $region11: #{tpu_custom_call.1} parent=0 // pred_check_branch
    %13 = sbr.rel (0) target = $region13
  $region12: #{tpu_custom_call.1} parent=0 // pred_region
    _
  $region13: #{tpu_custom_call.1} parent=0 // pred_fallthru
    _
  %v14 = vld [vmem:[%s0] sm:$0xff]
  %v15 = vld [vmem:[%s0 + $0x8] sm:$0xff]
  %v16 = vld [vmem:[%s1] sm:$0xff]
  %v17 = vld [vmem:[%s1 + $0x8] sm:$0xff]
  %vm18 = vcmask 80896
  %v19 = vsel %vm18, %v14, -inf
  %20 = vmax.xlane.f32.xlu0 %v19
  %v21 = vpop.xlane.xlu0 %20
  %v22 = vsel %vm18, %v15, -inf
  %23 = vmax.xlane.f32.xlu0 %v22
  %v24 = vpop.xlane.xlu0 %23
  %v25 = vsub.f32 %v14, %v21
  %v26 = vsub.f32 %v15, %v24
  %v27 = vmul.f32 %v25, 1.442695
  %v28 = vpow.pop %v27
  %v29 = vmul.f32 %v26, 1.442695
  %v30 = vpow.pop %v29
  %v31 = vsel %vm18, %v28, 0.0
  %32 = vadd.xlane.f32.xlu0 %v31
  %v33 = vpop.xlane.xlu0 %32
  %v34 = vsel %vm18, %v30, 0.0
  %35 = vadd.xlane.f32.xlu0 %v34
  %v36 = vpop.xlane.xlu0 %35
  %v37 = vlog2.pop %v33
  %v38 = vmul.f32 %v37, 0.6931472
  %v39 = vlog2.pop %v36
  %v40 = vmul.f32 %v39, 0.6931472
  %v41 = vsub.f32 %v25, %v38
  %v42 = vsub.f32 %v26, %v40
  %v43 = vlaneseq
  %v44 = vand.u32 %v43, 127
  %45 = vset.pattern.permute.xlu0 0
  %46 = vperm.xlu0 %45, %v16
  %v47 = vpop.permute.xlu0 %46
  %48 = vset.pattern.permute.xlu0 0
  %49 = vperm.xlu0 %48, %v17
  %v50 = vpop.permute.xlu0 %49
  %vm51 = vcmp.eq.s32.totalorder %v44, %v47
  %vm52 = vcmp.eq.s32.totalorder %v44, %v50
  %v53 = vsel %vm51, %v41, 0.0
  %v54 = vsel %vm52, %v42, 0.0
  %v55 = vsel %vm18, %v53, 0.0
  %56 = vadd.xlane.f32.xlu0 %v55
  %v57 = vpop.xlane.xlu0 %56
  %v58 = vsel %vm18, %v54, 0.0
  %59 = vadd.xlane.f32.xlu0 %v58
  %v60 = vpop.xlane.xlu0 %59
  %v61 = vld [vmem:[%s2] sm:$0x1]
  %v63 = vperm.slane %v61, 0
  %v65 = vsel %vm51, %v63, 0.0
  %v66 = vsel %vm52, %v63, 0.0
  %v67 = vsel %vm18, %v65, 0.0
  %68 = vadd.xlane.f32.xlu0 %v67
  %v69 = vpop.xlane.xlu0 %68
  %v70 = vsel %vm18, %v66, 0.0
  %71 = vadd.xlane.f32.xlu0 %v70
  %v72 = vpop.xlane.xlu0 %71
  %v73 = vmul.f32 %v57, %v69
  %v74 = vmul.f32 %v60, %v72
  %v75 = vmul.f32 %v73, -1.0
  %v76 = vmul.f32 %v74, -1.0
  %vm77 = vcmask 7168
  %78 = vst.msk [vmem:[%s3] sm:$0xff] %vm77, %v75
  %79 = vst.msk [vmem:[%s3 + $0x8] sm:$0xff] %vm77, %v76
  // Predicated region
  $region14: #{tpu_custom_call.1} parent=0 // pred_check
    _
  $region15: #{tpu_custom_call.1} parent=0 // pred_check_branch
    %81 = sbr.rel (0) target = $region17
  $region16: #{tpu_custom_call.1} parent=0 // pred_region
    _
  $region17: #{tpu_custom_call.1} parent=0 // pred_fallthru
    _
  // Predicated region
  $region18: #{tpu_custom_call.1} parent=0 // pred_check
    _
  $region19: #{tpu_custom_call.1} parent=0 // pred_check_branch
    %83 = sbr.rel (0) target = $region21
  $region20: #{tpu_custom_call.1} parent=0 // pred_region
    _
  $region21: #{tpu_custom_call.1} parent=0 // pred_fallthru
    _

</llo_original>
